<compile_context>
chip_gen: v5e
topology: v5e:2x2
jax: 0.10.0
libtpu: 0.0.40
codegen_flags: <defaults>
</compile_context>

<pallas_src>
import functools
import math

import jax
import jax.numpy as jnp
from jax.experimental import pallas as pl
from jax.experimental.pallas import tpu as pltpu


def _layernorm(x, gamma, beta, eps=1e-5):
    mu = jnp.mean(x, axis=-1, keepdims=True)
    var = jnp.mean((x - mu) ** 2, axis=-1, keepdims=True)
    return (x - mu) * jax.lax.rsqrt(var + eps) * gamma + beta


def block_kernel(x_ref, bias_ref,
                 ln1_g_ref, ln1_b_ref,
                 wqkv_ref, wo_ref, bo_ref,
                 ln2_g_ref, ln2_b_ref,
                 w1_ref, b1_ref, w2_ref, b2_ref,
                 o_ref,
                 *, n_head):
    x = x_ref[0].astype(jnp.float32)                      # (T, C) f32
    T, C = x.shape
    hs = C // n_head

    # ---------------- self-attention branch ----------------
    xn = _layernorm(x, ln1_g_ref[0], ln1_b_ref[0])        # (T, C) f32

    # Single fused QKV projection: one (T,C)x(C,3C) bf16 MXU matmul, f32 acc.
    # Wqkv columns are head-interleaved and the attention scale is already
    # folded into the Wq columns at the wrapper.
    qkv = jnp.dot(xn.astype(jnp.bfloat16), wqkv_ref[...],
                  preferred_element_type=jnp.float32)     # (T, 3C) f32

    # One relayout for the head split: H contiguous (T, 3*hs) lane slices
    # stacked along a new leading head axis, then three last-dim slices.
    g = jnp.stack([qkv[:, h * 3 * hs:(h + 1) * 3 * hs] for h in range(n_head)],
                  axis=0).astype(jnp.bfloat16)            # (H, T, 3*hs)
    q3 = g[:, :, 0:hs]                                    # (H, T, hs) bf16
    k3 = g[:, :, hs:2 * hs]
    v3 = g[:, :, 2 * hs:3 * hs]

    # Batched-head attention; additive mask bias precomputed in the wrapper.
    wei = jnp.einsum('hqd,hkd->hqk', q3, k3,
                     preferred_element_type=jnp.float32)  # (H, T, T) f32
    wei = wei + bias_ref[...][None, :, :]
    wei = wei - jnp.max(wei, axis=-1, keepdims=True)
    p = jnp.exp(wei)                                      # softmax in f32
    p = p * pl.reciprocal(jnp.sum(p, axis=-1, keepdims=True), approx=True)

    att = jnp.einsum('hqk,hkd->hqd', p.astype(jnp.bfloat16), v3,
                     preferred_element_type=jnp.float32)  # (H, T, hs) f32

    # Output projection contracted per head against Wo reshaped (H, hs, C) at
    # the wrapper, then summed over the small head axis: no (T,C) merge
    # scratch and no masked per-head lane-slice stores.
    proj = jnp.einsum('hqd,hdc->hqc', att.astype(jnp.bfloat16), wo_ref[...],
                      preferred_element_type=jnp.float32)  # (H, T, C) f32
    sa = proj[0]
    for h in range(1, n_head):                             # tiny VPU add tree
        sa = sa + proj[h]
    x = x + sa + bo_ref[0]                                 # residual 1 (f32)

    # ---------------- feed-forward branch ----------------
    xn2 = _layernorm(x, ln2_g_ref[0], ln2_b_ref[0])
    h1 = jnp.dot(xn2.astype(jnp.bfloat16), w1_ref[...],
                 preferred_element_type=jnp.float32) + b1_ref[0]
    h1 = jnp.maximum(h1, 0.0)                              # ReLU
    ff = jnp.dot(h1.astype(jnp.bfloat16), w2_ref[...],
                 preferred_element_type=jnp.float32) + b2_ref[0]
    x = x + ff                                             # residual 2 (f32)

    o_ref[0] = x.astype(o_ref.dtype)


def prepare_block_params(params, *, n_head):
    """One-time weight preparation (call OUTSIDE the per-step path).

    Fuses Q/K/V into a single head-interleaved (C, 3C) matrix with the
    1/sqrt(hs) scale folded into the Q columns, reshapes Wo to (H, hs, C),
    and casts all matmul weights to bf16 (kernels still accumulate in f32).
    """
    C = params["wq"].shape[0]
    hs = C // n_head
    scale = 1.0 / math.sqrt(hs)
    wq3 = (params["wq"] * scale).reshape(C, n_head, hs)
    wk3 = params["wk"].reshape(C, n_head, hs)
    wv3 = params["wv"].reshape(C, n_head, hs)
    # Column order: head-major, then (q, k, v), then hs -> [q_h|k_h|v_h] blocks.
    wqkv = jnp.stack([wq3, wk3, wv3], axis=2).reshape(C, 3 * C)
    return {
        "wqkv": wqkv.astype(jnp.bfloat16),                               # (C, 3C)
        "wo_h": params["wo"].reshape(n_head, hs, C).astype(jnp.bfloat16),
        "bo": params["bo"],
        "ln1_g": params["ln1_g"], "ln1_b": params["ln1_b"],
        "ln2_g": params["ln2_g"], "ln2_b": params["ln2_b"],
        "w1": params["w1"].astype(jnp.bfloat16), "b1": params["b1"],
        "w2": params["w2"].astype(jnp.bfloat16), "b2": params["b2"],
    }


def transformer_block(x, mask, prep, *, n_head):
    B, T, C = x.shape
    hs = C // n_head
    H4 = 4 * C

    # Additive attention bias computed once per call (plain JAX), not per
    # batch element inside the kernel. f32 avoids a per-step upcast on chips
    # without a bf16 VPU (v5e); the (T,T) DMA is negligible vs the weights.
    bias = jnp.where(mask == 0, jnp.float32(-1e9), jnp.float32(0.0))

    def rep2(shape):
        return pl.BlockSpec(shape, lambda b: (0, 0))

    def rep3(shape):
        return pl.BlockSpec(shape, lambda b: (0, 0, 0))

    kernel = functools.partial(block_kernel, n_head=n_head)

    # VMEM budget: double-buffered bf16 weights + f32 activations/logits plus
    # headroom for compiler-internal scratch; clamped so it stays inside v7x's
    # 64 MiB per-TensorCore VMEM (the B grid is sharded across both TCs there).
    weight_bytes = 2 * 2 * (12 * C * C)                          # 2 bufs, bf16
    act_bytes = 4 * (8 * T * C + 2 * n_head * T * T + T * H4)
    vmem_limit = int(min(56 << 20, max(32 << 20,
                                       weight_bytes + act_bytes + (8 << 20))))

    return pl.pallas_call(
        kernel,
        out_shape=jax.ShapeDtypeStruct((B, T, C), x.dtype),
        grid_spec=pltpu.PrefetchScalarGridSpec(
            num_scalar_prefetch=0,
            grid=(B,),
            in_specs=[
                pl.BlockSpec((1, T, C), lambda b: (b, 0, 0)),    # x
                rep2((T, T)),                                    # additive bias
                rep2((1, C)), rep2((1, C)),                      # ln1 gamma/beta
                rep2((C, 3 * C)),                                # Wqkv (bf16)
                rep3((n_head, hs, C)), rep2((1, C)),             # Wo per-head, bo
                rep2((1, C)), rep2((1, C)),                      # ln2 gamma/beta
                rep2((C, H4)), rep2((1, H4)),                    # W1 (bf16), b1
                rep2((H4, C)), rep2((1, C)),                     # W2 (bf16), b2
            ],
            out_specs=pl.BlockSpec((1, T, C), lambda b: (b, 0, 0)),
        ),
        compiler_params=pltpu.CompilerParams(
            # Batch elements are independent -> shard the B loop across
            # TensorCores on multi-TC chips (v7x); neutral on v5e/v6e.
            dimension_semantics=("parallel",),
            vmem_limit_bytes=vmem_limit,
        ),
    )(x, bias,
      prep["ln1_g"], prep["ln1_b"],
      prep["wqkv"], prep["wo_h"], prep["bo"],
      prep["ln2_g"], prep["ln2_b"],
      prep["w1"], prep["b1"], prep["w2"], prep["b2"])


def reference_block(x, mask, params, *, n_head):
    # Pure f32 reference (matches the PyTorch module's math).
    B, T, C = x.shape
    hs = C // n_head
    xn = _layernorm(x, params["ln1_g"][0], params["ln1_b"][0])
    q = xn @ params["wq"]
    k = xn @ params["wk"]
    v = xn @ params["wv"]
    q = q.reshape(B, T, n_head, hs).transpose(0, 2, 1, 3)
    k = k.reshape(B, T, n_head, hs).transpose(0, 2, 1, 3)
    v = v.reshape(B, T, n_head, hs).transpose(0, 2, 1, 3)
    wei = jnp.einsum("bhqd,bhkd->bhqk", q, k) / (hs ** 0.5)
    wei = jnp.where(mask[None, None] == 0, -1e9, wei)
    p = jax.nn.softmax(wei, axis=-1)
    att = jnp.einsum("bhqk,bhkd->bhqd", p, v).transpose(0, 2, 1, 3).reshape(B, T, C)
    x = x + att @ params["wo"] + params["bo"][0]
    xn2 = _layernorm(x, params["ln2_g"][0], params["ln2_b"][0])
    ff = jnp.maximum(xn2 @ params["w1"] + params["b1"][0], 0.0) @ params["w2"] + params["b2"][0]
    return x + ff


def init_params(key, n_embd):
    H4 = 4 * n_embd
    ks = jax.random.split(key, 8)
    s = 0.02
    return {
        "ln1_g": jnp.ones((1, n_embd), jnp.float32),
        "ln1_b": jnp.zeros((1, n_embd), jnp.float32),
        "wq": s * jax.random.normal(ks[0], (n_embd, n_embd), jnp.float32),
        "wk": s * jax.random.normal(ks[1], (n_embd, n_embd), jnp.float32),
        "wv": s * jax.random.normal(ks[2], (n_embd, n_embd), jnp.float32),
        "wo": s * jax.random.normal(ks[3], (n_embd, n_embd), jnp.float32),
        "bo": s * jax.random.normal(ks[4], (1, n_embd), jnp.float32),
        "ln2_g": jnp.ones((1, n_embd), jnp.float32),
        "ln2_b": jnp.zeros((1, n_embd), jnp.float32),
        "w1": s * jax.random.normal(ks[5], (n_embd, H4), jnp.float32),
        "b1": jnp.zeros((1, H4), jnp.float32),
        "w2": s * jax.random.normal(ks[6], (H4, n_embd), jnp.float32),
        "b2": jnp.zeros((1, n_embd), jnp.float32),
    }


if __name__ == "__main__":
    B, T, C, n_head = 2, 8, 32, 4
    key = jax.random.PRNGKey(0)
    kx, kp = jax.random.split(key)
    x = jax.random.normal(kx, (B, T, C), jnp.float32)
    params = init_params(kp, C)
    # causal mask (lower-triangular); positions with 0 are masked out
    mask = jnp.tril(jnp.ones((T, T), jnp.float32))

    # One-time bf16 weight fusion/cast, outside the per-call path.
    prep = prepare_block_params(params, n_head=n_head)

    out = transformer_block(x, mask, prep, n_head=n_head)
    out = jax.block_until_ready(out)

    ref = reference_block(x, mask, params, n_head=n_head)
    assert out.shape == (B, T, C)
    # Kernel runs its matmuls in bf16 (f32 accumulation) and uses an
    # approximate-reciprocal softmax denominator, so compare against the f32
    # reference with a bf16-appropriate tolerance.
    err = float(jnp.max(jnp.abs(out - ref)))
    assert err < 2e-2, f"mismatch vs reference: max|diff|={err}"
    print("KERNEL_OK")
</pallas_src>

<mosaic_0001>
module attributes {stable_mosaic.version = 11 : i64} {
  func.func @block_kernel(%arg0: i32, %arg1: memref<1x8x32xf32, #tpu.memory_space<vmem>>, %arg2: memref<8x8xf32, #tpu.memory_space<vmem>>, %arg3: memref<1x32xf32, #tpu.memory_space<vmem>>, %arg4: memref<1x32xf32, #tpu.memory_space<vmem>>, %arg5: memref<32x96xbf16, #tpu.memory_space<vmem>>, %arg6: memref<4x8x32xbf16, #tpu.memory_space<vmem>>, %arg7: memref<1x32xf32, #tpu.memory_space<vmem>>, %arg8: memref<1x32xf32, #tpu.memory_space<vmem>>, %arg9: memref<1x32xf32, #tpu.memory_space<vmem>>, %arg10: memref<32x128xbf16, #tpu.memory_space<vmem>>, %arg11: memref<1x128xf32, #tpu.memory_space<vmem>>, %arg12: memref<128x32xbf16, #tpu.memory_space<vmem>>, %arg13: memref<1x32xf32, #tpu.memory_space<vmem>>, %arg14: memref<1x8x32xf32, #tpu.memory_space<vmem>>) attributes {dimension_semantics = [#tpu.dimension_semantics<parallel>], iteration_bounds = array<i64: 2>, scalar_prefetch = 0 : i64, scratch_operands = 0 : i64, tpu.core_type = #tpu.core_type<tc>, window_params = [{transform_indices = @transform_0, window_bounds = array<i64: 1, 8, 32>}, {pipeline_mode = #tpu.pipeline_mode<synchronous>, transform_indices = @transform_1, window_bounds = array<i64: 8, 8>}, {pipeline_mode = #tpu.pipeline_mode<synchronous>, transform_indices = @transform_2, window_bounds = array<i64: 1, 32>}, {pipeline_mode = #tpu.pipeline_mode<synchronous>, transform_indices = @transform_3, window_bounds = array<i64: 1, 32>}, {pipeline_mode = #tpu.pipeline_mode<synchronous>, transform_indices = @transform_4, window_bounds = array<i64: 32, 96>}, {pipeline_mode = #tpu.pipeline_mode<synchronous>, transform_indices = @transform_5, window_bounds = array<i64: 4, 8, 32>}, {pipeline_mode = #tpu.pipeline_mode<synchronous>, transform_indices = @transform_6, window_bounds = array<i64: 1, 32>}, {pipeline_mode = #tpu.pipeline_mode<synchronous>, transform_indices = @transform_7, window_bounds = array<i64: 1, 32>}, {pipeline_mode = #tpu.pipeline_mode<synchronous>, transform_indices = @transform_8, window_bounds = array<i64: 1, 32>}, {pipeline_mode = #tpu.pipeline_mode<synchronous>, transform_indices = @transform_9, window_bounds = array<i64: 32, 128>}, {pipeline_mode = #tpu.pipeline_mode<synchronous>, transform_indices = @transform_10, window_bounds = array<i64: 1, 128>}, {pipeline_mode = #tpu.pipeline_mode<synchronous>, transform_indices = @transform_11, window_bounds = array<i64: 128, 32>}, {pipeline_mode = #tpu.pipeline_mode<synchronous>, transform_indices = @transform_12, window_bounds = array<i64: 1, 32>}, {transform_indices = @transform_13, window_bounds = array<i64: 1, 8, 32>}]} {
    %c0 = arith.constant 0 : index
    %c0_0 = arith.constant 0 : index
    %c0_1 = arith.constant 0 : index
    %0 = vector.load %arg1[%c0, %c0_0, %c0_1] : memref<1x8x32xf32, #tpu.memory_space<vmem>>, vector<1x8x32xf32>
    %1 = vector.shape_cast %0 : vector<1x8x32xf32> to vector<8x32xf32>
    %c0_2 = arith.constant 0 : index
    %c0_3 = arith.constant 0 : index
    %2 = vector.load %arg3[%c0_2, %c0_3] : memref<1x32xf32, #tpu.memory_space<vmem>>, vector<1x32xf32>
    %3 = vector.shape_cast %2 : vector<1x32xf32> to vector<32xf32>
    %c0_4 = arith.constant 0 : index
    %c0_5 = arith.constant 0 : index
    %4 = vector.load %arg4[%c0_4, %c0_5] : memref<1x32xf32, #tpu.memory_space<vmem>>, vector<1x32xf32>
    %5 = vector.shape_cast %4 : vector<1x32xf32> to vector<32xf32>
    %cst = arith.constant dense<0.000000e+00> : vector<8xf32>
    %6 = vector.multi_reduction <add>, %1, %cst [1] : vector<8x32xf32> to vector<8xf32>
    %7 = vector.shape_cast %6 : vector<8xf32> to vector<8x1xf32>
    %cst_6 = arith.constant 3.200000e+01 : f32
    %8 = vector.broadcast %cst_6 : f32 to vector<8x1xf32>
    %9 = arith.divf %7, %8 : vector<8x1xf32>
    %10 = vector.broadcast %9 : vector<8x1xf32> to vector<8x32xf32>
    %11 = arith.subf %1, %10 : vector<8x32xf32>
    %12 = arith.mulf %11, %11 : vector<8x32xf32>
    %cst_7 = arith.constant dense<0.000000e+00> : vector<8xf32>
    %13 = vector.multi_reduction <add>, %12, %cst_7 [1] : vector<8x32xf32> to vector<8xf32>
    %14 = vector.shape_cast %13 : vector<8xf32> to vector<8x1xf32>
    %cst_8 = arith.constant 3.200000e+01 : f32
    %15 = vector.broadcast %cst_8 : f32 to vector<8x1xf32>
    %16 = arith.divf %14, %15 : vector<8x1xf32>
    %17 = vector.broadcast %9 : vector<8x1xf32> to vector<8x32xf32>
    %18 = arith.subf %1, %17 : vector<8x32xf32>
    %cst_9 = arith.constant 9.99999974E-6 : f32
    %19 = vector.broadcast %cst_9 : f32 to vector<8x1xf32>
    %20 = arith.addf %16, %19 : vector<8x1xf32>
    %21 = math.rsqrt %20 : vector<8x1xf32>
    %22 = vector.broadcast %21 : vector<8x1xf32> to vector<8x32xf32>
    %23 = arith.mulf %18, %22 : vector<8x32xf32>
    %24 = vector.shape_cast %3 : vector<32xf32> to vector<1x32xf32>
    %25 = vector.broadcast %24 : vector<1x32xf32> to vector<8x32xf32>
    %26 = arith.mulf %23, %25 : vector<8x32xf32>
    %27 = vector.shape_cast %5 : vector<32xf32> to vector<1x32xf32>
    %28 = vector.broadcast %27 : vector<1x32xf32> to vector<8x32xf32>
    %29 = arith.addf %26, %28 : vector<8x32xf32>
    %30 = arith.truncf %29 : vector<8x32xf32> to vector<8x32xbf16>
    %c0_10 = arith.constant 0 : index
    %c0_11 = arith.constant 0 : index
    %31 = vector.load %arg5[%c0_10, %c0_11] : memref<32x96xbf16, #tpu.memory_space<vmem>>, vector<32x96xbf16>
    %cst_12 = arith.constant dense<0.000000e+00> : vector<8x96xf32>
    %32 = tpu.matmul %30, %31, %cst_12 {dimension_numbers = #tpu.dot_dimension_numbers<[1], [0], [0], [1], [0, 0, 1, 1], [], []>} : vector<8x32xbf16>, vector<32x96xbf16>, vector<8x96xf32> -> vector<8x96xf32>
    %33 = vector.extract_strided_slice %32 {offsets = [0, 0], sizes = [8, 24], strides = [1, 1]} : vector<8x96xf32> to vector<8x24xf32>
    %34 = vector.extract_strided_slice %32 {offsets = [0, 24], sizes = [8, 24], strides = [1, 1]} : vector<8x96xf32> to vector<8x24xf32>
    %35 = vector.extract_strided_slice %32 {offsets = [0, 48], sizes = [8, 24], strides = [1, 1]} : vector<8x96xf32> to vector<8x24xf32>
    %36 = vector.extract_strided_slice %32 {offsets = [0, 72], sizes = [8, 24], strides = [1, 1]} : vector<8x96xf32> to vector<8x24xf32>
    %37 = vector.shape_cast %33 : vector<8x24xf32> to vector<1x8x24xf32>
    %38 = vector.shape_cast %34 : vector<8x24xf32> to vector<1x8x24xf32>
    %39 = vector.shape_cast %35 : vector<8x24xf32> to vector<1x8x24xf32>
    %40 = vector.shape_cast %36 : vector<8x24xf32> to vector<1x8x24xf32>
    %41 = tpu.concatenate %37, %38, %39, %40 in 0 : vector<1x8x24xf32>, vector<1x8x24xf32>, vector<1x8x24xf32>, vector<1x8x24xf32> -> vector<4x8x24xf32>
    %42 = arith.truncf %41 : vector<4x8x24xf32> to vector<4x8x24xbf16>
    %43 = vector.extract_strided_slice %42 {offsets = [0, 0, 0], sizes = [4, 8, 8], strides = [1, 1, 1]} : vector<4x8x24xbf16> to vector<4x8x8xbf16>
    %44 = vector.extract_strided_slice %42 {offsets = [0, 0, 8], sizes = [4, 8, 8], strides = [1, 1, 1]} : vector<4x8x24xbf16> to vector<4x8x8xbf16>
    %45 = vector.extract_strided_slice %42 {offsets = [0, 0, 16], sizes = [4, 8, 8], strides = [1, 1, 1]} : vector<4x8x24xbf16> to vector<4x8x8xbf16>
    "tpu.trace_start"() <{level = 10 : i32, message = "hqd,hkd->hqk"}> : () -> ()
    %cst_13 = arith.constant dense<0.000000e+00> : vector<4x8x8xf32>
    %46 = tpu.matmul %43, %44, %cst_13 {dimension_numbers = #tpu.dot_dimension_numbers<[2], [2], [1], [1], [0, 0, 0, 1, 1, 1], [0], [0]>} : vector<4x8x8xbf16>, vector<4x8x8xbf16>, vector<4x8x8xf32> -> vector<4x8x8xf32>
    "tpu.trace_stop"() : () -> ()
    %c0_14 = arith.constant 0 : index
    %c0_15 = arith.constant 0 : index
    %47 = vector.load %arg2[%c0_14, %c0_15] : memref<8x8xf32, #tpu.memory_space<vmem>>, vector<8x8xf32>
    %48 = vector.shape_cast %47 : vector<8x8xf32> to vector<1x8x8xf32>
    %49 = vector.broadcast %48 : vector<1x8x8xf32> to vector<4x8x8xf32>
    %50 = arith.addf %46, %49 : vector<4x8x8xf32>
    %cst_16 = arith.constant dense<0xFF800000> : vector<4x8xf32>
    %51 = vector.multi_reduction <maximumf>, %50, %cst_16 [2] : vector<4x8x8xf32> to vector<4x8xf32>
    %52 = vector.shape_cast %51 : vector<4x8xf32> to vector<4x8x1xf32>
    %53 = vector.broadcast %52 : vector<4x8x1xf32> to vector<4x8x8xf32>
    %54 = arith.subf %50, %53 : vector<4x8x8xf32>
    %55 = math.exp %54 : vector<4x8x8xf32>
    %cst_17 = arith.constant dense<0.000000e+00> : vector<4x8xf32>
    %56 = vector.multi_reduction <add>, %55, %cst_17 [2] : vector<4x8x8xf32> to vector<4x8xf32>
    %57 = vector.shape_cast %56 : vector<4x8xf32> to vector<4x8x1xf32>
    %58 = tpu.reciprocal %57 {approx = true} : vector<4x8x1xf32> -> vector<4x8x1xf32>
    %59 = vector.broadcast %58 : vector<4x8x1xf32> to vector<4x8x8xf32>
    %60 = arith.mulf %55, %59 : vector<4x8x8xf32>
    %61 = arith.truncf %60 : vector<4x8x8xf32> to vector<4x8x8xbf16>
    "tpu.trace_start"() <{level = 10 : i32, message = "hqk,hkd->hqd"}> : () -> ()
    %cst_18 = arith.constant dense<0.000000e+00> : vector<4x8x8xf32>
    %62 = tpu.matmul %61, %45, %cst_18 {dimension_numbers = #tpu.dot_dimension_numbers<[2], [1], [1], [2], [0, 0, 0, 1, 1, 2], [0], [0]>} : vector<4x8x8xbf16>, vector<4x8x8xbf16>, vector<4x8x8xf32> -> vector<4x8x8xf32>
    "tpu.trace_stop"() : () -> ()
    %63 = arith.truncf %62 : vector<4x8x8xf32> to vector<4x8x8xbf16>
    %c0_19 = arith.constant 0 : index
    %c0_20 = arith.constant 0 : index
    %c0_21 = arith.constant 0 : index
    %64 = vector.load %arg6[%c0_19, %c0_20, %c0_21] : memref<4x8x32xbf16, #tpu.memory_space<vmem>>, vector<4x8x32xbf16>
    "tpu.trace_start"() <{level = 10 : i32, message = "hqd,hdc->hqc"}> : () -> ()
    %cst_22 = arith.constant dense<0.000000e+00> : vector<4x8x32xf32>
    %65 = tpu.matmul %63, %64, %cst_22 {dimension_numbers = #tpu.dot_dimension_numbers<[2], [1], [1], [2], [0, 0, 0, 1, 1, 2], [0], [0]>} : vector<4x8x8xbf16>, vector<4x8x32xbf16>, vector<4x8x32xf32> -> vector<4x8x32xf32>
    "tpu.trace_stop"() : () -> ()
    %66 = vector.extract_strided_slice %65 {offsets = [0, 0, 0], sizes = [1, 8, 32], strides = [1, 1, 1]} : vector<4x8x32xf32> to vector<1x8x32xf32>
    %67 = vector.shape_cast %66 : vector<1x8x32xf32> to vector<8x32xf32>
    %68 = vector.extract_strided_slice %65 {offsets = [1, 0, 0], sizes = [1, 8, 32], strides = [1, 1, 1]} : vector<4x8x32xf32> to vector<1x8x32xf32>
    %69 = vector.shape_cast %68 : vector<1x8x32xf32> to vector<8x32xf32>
    %70 = arith.addf %67, %69 : vector<8x32xf32>
    %71 = vector.extract_strided_slice %65 {offsets = [2, 0, 0], sizes = [1, 8, 32], strides = [1, 1, 1]} : vector<4x8x32xf32> to vector<1x8x32xf32>
    %72 = vector.shape_cast %71 : vector<1x8x32xf32> to vector<8x32xf32>
    %73 = arith.addf %70, %72 : vector<8x32xf32>
    %74 = vector.extract_strided_slice %65 {offsets = [3, 0, 0], sizes = [1, 8, 32], strides = [1, 1, 1]} : vector<4x8x32xf32> to vector<1x8x32xf32>
    %75 = vector.shape_cast %74 : vector<1x8x32xf32> to vector<8x32xf32>
    %76 = arith.addf %73, %75 : vector<8x32xf32>
    %77 = arith.addf %1, %76 : vector<8x32xf32>
    %c0_23 = arith.constant 0 : index
    %c0_24 = arith.constant 0 : index
    %78 = vector.load %arg7[%c0_23, %c0_24] : memref<1x32xf32, #tpu.memory_space<vmem>>, vector<1x32xf32>
    %79 = vector.shape_cast %78 : vector<1x32xf32> to vector<32xf32>
    %80 = vector.shape_cast %79 : vector<32xf32> to vector<1x32xf32>
    %81 = vector.broadcast %80 : vector<1x32xf32> to vector<8x32xf32>
    %82 = arith.addf %77, %81 : vector<8x32xf32>
    %c0_25 = arith.constant 0 : index
    %c0_26 = arith.constant 0 : index
    %83 = vector.load %arg8[%c0_25, %c0_26] : memref<1x32xf32, #tpu.memory_space<vmem>>, vector<1x32xf32>
    %84 = vector.shape_cast %83 : vector<1x32xf32> to vector<32xf32>
    %c0_27 = arith.constant 0 : index
    %c0_28 = arith.constant 0 : index
    %85 = vector.load %arg9[%c0_27, %c0_28] : memref<1x32xf32, #tpu.memory_space<vmem>>, vector<1x32xf32>
    %86 = vector.shape_cast %85 : vector<1x32xf32> to vector<32xf32>
    %cst_29 = arith.constant dense<0.000000e+00> : vector<8xf32>
    %87 = vector.multi_reduction <add>, %82, %cst_29 [1] : vector<8x32xf32> to vector<8xf32>
    %88 = vector.shape_cast %87 : vector<8xf32> to vector<8x1xf32>
    %cst_30 = arith.constant 3.200000e+01 : f32
    %89 = vector.broadcast %cst_30 : f32 to vector<8x1xf32>
    %90 = arith.divf %88, %89 : vector<8x1xf32>
    %91 = vector.broadcast %90 : vector<8x1xf32> to vector<8x32xf32>
    %92 = arith.subf %82, %91 : vector<8x32xf32>
    %93 = arith.mulf %92, %92 : vector<8x32xf32>
    %cst_31 = arith.constant dense<0.000000e+00> : vector<8xf32>
    %94 = vector.multi_reduction <add>, %93, %cst_31 [1] : vector<8x32xf32> to vector<8xf32>
    %95 = vector.shape_cast %94 : vector<8xf32> to vector<8x1xf32>
    %cst_32 = arith.constant 3.200000e+01 : f32
    %96 = vector.broadcast %cst_32 : f32 to vector<8x1xf32>
    %97 = arith.divf %95, %96 : vector<8x1xf32>
    %98 = vector.broadcast %90 : vector<8x1xf32> to vector<8x32xf32>
    %99 = arith.subf %82, %98 : vector<8x32xf32>
    %cst_33 = arith.constant 9.99999974E-6 : f32
    %100 = vector.broadcast %cst_33 : f32 to vector<8x1xf32>
    %101 = arith.addf %97, %100 : vector<8x1xf32>
    %102 = math.rsqrt %101 : vector<8x1xf32>
    %103 = vector.broadcast %102 : vector<8x1xf32> to vector<8x32xf32>
    %104 = arith.mulf %99, %103 : vector<8x32xf32>
    %105 = vector.shape_cast %84 : vector<32xf32> to vector<1x32xf32>
    %106 = vector.broadcast %105 : vector<1x32xf32> to vector<8x32xf32>
    %107 = arith.mulf %104, %106 : vector<8x32xf32>
    %108 = vector.shape_cast %86 : vector<32xf32> to vector<1x32xf32>
    %109 = vector.broadcast %108 : vector<1x32xf32> to vector<8x32xf32>
    %110 = arith.addf %107, %109 : vector<8x32xf32>
    %111 = arith.truncf %110 : vector<8x32xf32> to vector<8x32xbf16>
    %c0_34 = arith.constant 0 : index
    %c0_35 = arith.constant 0 : index
    %112 = vector.load %arg10[%c0_34, %c0_35] : memref<32x128xbf16, #tpu.memory_space<vmem>>, vector<32x128xbf16>
    %cst_36 = arith.constant dense<0.000000e+00> : vector<8x128xf32>
    %113 = tpu.matmul %111, %112, %cst_36 {dimension_numbers = #tpu.dot_dimension_numbers<[1], [0], [0], [1], [0, 0, 1, 1], [], []>} : vector<8x32xbf16>, vector<32x128xbf16>, vector<8x128xf32> -> vector<8x128xf32>
    %c0_37 = arith.constant 0 : index
    %c0_38 = arith.constant 0 : index
    %114 = vector.load %arg11[%c0_37, %c0_38] : memref<1x128xf32, #tpu.memory_space<vmem>>, vector<1x128xf32>
    %115 = vector.shape_cast %114 : vector<1x128xf32> to vector<128xf32>
    %116 = vector.shape_cast %115 : vector<128xf32> to vector<1x128xf32>
    %117 = vector.broadcast %116 : vector<1x128xf32> to vector<8x128xf32>
    %118 = arith.addf %113, %117 : vector<8x128xf32>
    %cst_39 = arith.constant 0.000000e+00 : f32
    %119 = vector.broadcast %cst_39 : f32 to vector<8x128xf32>
    %120 = arith.maximumf %118, %119 : vector<8x128xf32>
    %121 = arith.truncf %120 : vector<8x128xf32> to vector<8x128xbf16>
    %c0_40 = arith.constant 0 : index
    %c0_41 = arith.constant 0 : index
    %122 = vector.load %arg12[%c0_40, %c0_41] : memref<128x32xbf16, #tpu.memory_space<vmem>>, vector<128x32xbf16>
    %cst_42 = arith.constant dense<0.000000e+00> : vector<8x32xf32>
    %123 = tpu.matmul %121, %122, %cst_42 {dimension_numbers = #tpu.dot_dimension_numbers<[1], [0], [0], [1], [0, 0, 1, 1], [], []>} : vector<8x128xbf16>, vector<128x32xbf16>, vector<8x32xf32> -> vector<8x32xf32>
    %c0_43 = arith.constant 0 : index
    %c0_44 = arith.constant 0 : index
    %124 = vector.load %arg13[%c0_43, %c0_44] : memref<1x32xf32, #tpu.memory_space<vmem>>, vector<1x32xf32>
    %125 = vector.shape_cast %124 : vector<1x32xf32> to vector<32xf32>
    %126 = vector.shape_cast %125 : vector<32xf32> to vector<1x32xf32>
    %127 = vector.broadcast %126 : vector<1x32xf32> to vector<8x32xf32>
    %128 = arith.addf %123, %127 : vector<8x32xf32>
    %129 = arith.addf %82, %128 : vector<8x32xf32>
    %c0_45 = arith.constant 0 : index
    %c0_46 = arith.constant 0 : index
    %c0_47 = arith.constant 0 : index
    %130 = vector.load %arg14[%c0_45, %c0_46, %c0_47] : memref<1x8x32xf32, #tpu.memory_space<vmem>>, vector<1x8x32xf32>
    %131 = vector.shape_cast %130 : vector<1x8x32xf32> to vector<8x32xf32>
    %132 = vector.shape_cast %129 : vector<8x32xf32> to vector<1x8x32xf32>
    tpu.vector_store %arg14[%c0_45, %c0_46, %c0_47], %132 {strides = array<i32>} : memref<1x8x32xf32, #tpu.memory_space<vmem>>, vector<1x8x32xf32>,
    return
  }
  func.func @transform_0(%arg0: i32) -> (i32, i32, i32) {
    %c0_i32 = arith.constant 0 : i32
    %c0_i32_0 = arith.constant 0 : i32
    %c0_i32_1 = arith.constant 0 : i32
    return %arg0, %c0_i32, %c0_i32_0 : i32, i32, i32
  }
  func.func @transform_1(%arg0: i32) -> (i32, i32) {
    %c0_i32 = arith.constant 0 : i32
    %c0_i32_0 = arith.constant 0 : i32
    %c0_i32_1 = arith.constant 0 : i32
    return %c0_i32, %c0_i32_0 : i32, i32
  }
  func.func @transform_2(%arg0: i32) -> (i32, i32) {
    %c0_i32 = arith.constant 0 : i32
    %c0_i32_0 = arith.constant 0 : i32
    %c0_i32_1 = arith.constant 0 : i32
    return %c0_i32, %c0_i32_0 : i32, i32
  }
  func.func @transform_3(%arg0: i32) -> (i32, i32) {
    %c0_i32 = arith.constant 0 : i32
    %c0_i32_0 = arith.constant 0 : i32
    %c0_i32_1 = arith.constant 0 : i32
    return %c0_i32, %c0_i32_0 : i32, i32
  }
  func.func @transform_4(%arg0: i32) -> (i32, i32) {
    %c0_i32 = arith.constant 0 : i32
    %c0_i32_0 = arith.constant 0 : i32
    %c0_i32_1 = arith.constant 0 : i32
    return %c0_i32, %c0_i32_0 : i32, i32
  }
  func.func @transform_5(%arg0: i32) -> (i32, i32, i32) {
    %c0_i32 = arith.constant 0 : i32
    %c0_i32_0 = arith.constant 0 : i32
    %c0_i32_1 = arith.constant 0 : i32
    %c0_i32_2 = arith.constant 0 : i32
    return %c0_i32, %c0_i32_0, %c0_i32_1 : i32, i32, i32
  }
  func.func @transform_6(%arg0: i32) -> (i32, i32) {
    %c0_i32 = arith.constant 0 : i32
    %c0_i32_0 = arith.constant 0 : i32
    %c0_i32_1 = arith.constant 0 : i32
    return %c0_i32, %c0_i32_0 : i32, i32
  }
  func.func @transform_7(%arg0: i32) -> (i32, i32) {
    %c0_i32 = arith.constant 0 : i32
    %c0_i32_0 = arith.constant 0 : i32
    %c0_i32_1 = arith.constant 0 : i32
    return %c0_i32, %c0_i32_0 : i32, i32
  }
  func.func @transform_8(%arg0: i32) -> (i32, i32) {
    %c0_i32 = arith.constant 0 : i32
    %c0_i32_0 = arith.constant 0 : i32
    %c0_i32_1 = arith.constant 0 : i32
    return %c0_i32, %c0_i32_0 : i32, i32
  }
  func.func @transform_9(%arg0: i32) -> (i32, i32) {
    %c0_i32 = arith.constant 0 : i32
    %c0_i32_0 = arith.constant 0 : i32
    %c0_i32_1 = arith.constant 0 : i32
    return %c0_i32, %c0_i32_0 : i32, i32
  }
  func.func @transform_10(%arg0: i32) -> (i32, i32) {
    %c0_i32 = arith.constant 0 : i32
    %c0_i32_0 = arith.constant 0 : i32
    %c0_i32_1 = arith.constant 0 : i32
    return %c0_i32, %c0_i32_0 : i32, i32
  }
  func.func @transform_11(%arg0: i32) -> (i32, i32) {
    %c0_i32 = arith.constant 0 : i32
    %c0_i32_0 = arith.constant 0 : i32
    %c0_i32_1 = arith.constant 0 : i32
    return %c0_i32, %c0_i32_0 : i32, i32
  }
  func.func @transform_12(%arg0: i32) -> (i32, i32) {
    %c0_i32 = arith.constant 0 : i32
    %c0_i32_0 = arith.constant 0 : i32
    %c0_i32_1 = arith.constant 0 : i32
    return %c0_i32, %c0_i32_0 : i32, i32
  }
  func.func @transform_13(%arg0: i32) -> (i32, i32, i32) {
    %c0_i32 = arith.constant 0 : i32
    %c0_i32_0 = arith.constant 0 : i32
    %c0_i32_1 = arith.constant 0 : i32
    return %arg0, %c0_i32, %c0_i32_0 : i32, i32, i32
  }
}

</mosaic_0001>

<llo_original>
// kernel: tpu_custom_call.1
$region0: #{tpu_custom_call.1}
  #allocation0 [shape = 'u32[]', space=smem, size = 0x4, offset = 0x4, fixed_abs, tag = 'smem constant byte address 0x4 - core index']
  #allocation1 [shape = 'u32[72,128]{1,0:T(1,128)}', space=vmem, size = 0x9000, scoped, tag = 'internal scratch']
  %s0 = inlined_call_operand.vmem [shape: f32[2,8,32], index: 0, kind: input, shape index: {}]
  %s1 = inlined_call_operand.vmem [shape: f32[8,8], index: 1, kind: input, shape index: {}]
  %s2 = inlined_call_operand.vmem [shape: f32[1,32], index: 2, kind: input, shape index: {}]
  %s3 = inlined_call_operand.vmem [shape: f32[1,32], index: 3, kind: input, shape index: {}]
  %s4 = inlined_call_operand.vmem [shape: bf16[32,96], index: 4, kind: input, shape index: {}]
  %s5 = inlined_call_operand.vmem [shape: bf16[4,8,32], index: 5, kind: input, shape index: {}]
  %s6 = inlined_call_operand.vmem [shape: f32[1,32], index: 6, kind: input, shape index: {}]
  %s7 = inlined_call_operand.vmem [shape: f32[1,32], index: 7, kind: input, shape index: {}]
  %s8 = inlined_call_operand.vmem [shape: f32[1,32], index: 8, kind: input, shape index: {}]
  %s9 = inlined_call_operand.vmem [shape: bf16[32,128], index: 9, kind: input, shape index: {}]
  %s10 = inlined_call_operand.vmem [shape: f32[1,128], index: 10, kind: input, shape index: {}]
  %s11 = inlined_call_operand.vmem [shape: bf16[128,32], index: 11, kind: input, shape index: {}]
  %s12 = inlined_call_operand.vmem [shape: f32[1,32], index: 12, kind: input, shape index: {}]
  %s13 = inlined_call_operand.hbm [shape: f32[2,8,32], index: 13, kind: output, shape index: {}]
  %s14 = sld [smem:[#allocation0]]
  $region85: #{tpu_custom_call.1} parent=0
    _
  %s16 = ssub.s32 1, %s14
  %s17 = scalar_select 0, %s16, %s14
  $region1: #{tpu_custom_call.1} parent=0
    #allocation2 [shape = 'u8[8192]{0}', space=vmem, size = 0x2000, scoped, tag = 'output window, operand 0']
    #allocation3 [shape = 's32[2]{0}', space=sflag, size = 0x8, scoped, tag = 'scoped memory for tpu_custom_call.1']
    %18 = vsyncpa [#allocation3], 0
    %s19 = scalar_lea.sflag [#allocation3], 1
    %20 = vsyncpa %s19, 0
    loop: start=0, step=1, limit=4
    $region2: #{tpu_custom_call.1} parent=1 // loop_pre_header
      _
    $region3: #{tpu_custom_call.1} parent=1 // loop_header
      %s22 = sphi 0, %s26
      %p23 = scmp.ge.s32.totalorder %s22, 4
      %s32 = sphi 0, %s34
      %s35 = sphi 0, %s32
      %s36 = sphi 0, %s35
      %s52 = sphi 0, %s36
      %s56 = sphi 0, %s56
      %s58 = sphi 0, %s56
      %s59 = sphi 0, %s58
      %s73 = sphi 0, %s59
      %s77 = sphi 0, %s77
      %s79 = sphi 0, %s77
      %s80 = sphi 0, %s79
      %s94 = sphi 0, %s80
      %s98 = sphi 0, %s98
      %s100 = sphi 0, %s98
      %s101 = sphi 0, %s100
      %s115 = sphi 0, %s101
      %s119 = sphi 0, %s119
      %s121 = sphi 0, %s119
      %s122 = sphi 0, %s121
      %s136 = sphi 0, %s122
      %s140 = sphi 0, %s140
      %s142 = sphi 0, %s140
      %s143 = sphi 0, %s142
      %s157 = sphi 0, %s143
      %s161 = sphi 0, %s161
      %s163 = sphi 0, %s161
      %s164 = sphi 0, %s163
      %s178 = sphi 0, %s164
      %s182 = sphi 0, %s182
      %s184 = sphi 0, %s182
      %s185 = sphi 0, %s184
      %s199 = sphi 0, %s185
      %s203 = sphi 0, %s203
      %s205 = sphi 0, %s203
      %s206 = sphi 0, %s205
      %s220 = sphi 0, %s206
      %s224 = sphi 0, %s224
      %s226 = sphi 0, %s224
      %s227 = sphi 0, %s226
      %s241 = sphi 0, %s227
      %s245 = sphi 0, %s245
      %s247 = sphi 0, %s245
      %s248 = sphi 0, %s247
      %s262 = sphi 0, %s248
      %s266 = sphi 0, %s266
      %s268 = sphi 0, %s266
      %s269 = sphi 0, %s268
      %s283 = sphi 0, %s269
      %s287 = sphi 0, %s287
      %s289 = sphi 0, %s287
      %s290 = sphi 0, %s289
      %s304 = sphi 0, %s290
      %s310 = sphi 0, %s312
      %s313 = sphi 0, %s310
      %s314 = sphi 0, %s313
      %s330 = sphi 0, %s314
    $region4: #{tpu_custom_call.1} parent=1 // loop_header_branch
      %25 = sbr.rel (%p23) target = $region8
    $region5: #{tpu_custom_call.1} parent=1 // loop_body
      %s27 = ssub.s32 %s22, 1
      %s28 = ssub.s32 %s22, 2
      %s29 = sadd.s32 %s22, 1
      %s30 = ssub.s32 %s22, %s29
      %p31 = scmp.eq.s32.totalorder %s30, 0
      %s33 = sadd.s32 %s32, 1
      %s34 = scalar_select %p31, %s32, %s33
      %p37 = pneg %p31
      %p38 = scmp.eq.s32.totalorder %s22, 1
      %p39 = por %p37, %p38
      %p40 = scmp.ne.s32.totalorder %s32, %s35
      %p41 = scmp.eq.s32.totalorder %s22, 0
      %p42 = por %p40, %p41
      %p43 = scmp.ne.s32.totalorder %s32, %s35
      %p44 = scmp.eq.s32.totalorder %s27, 1
      %p45 = por %p43, %p44
      %p46 = scmp.ne.s32.totalorder %s35, %s36
      %p47 = scmp.eq.s32.totalorder %s27, 0
      %p48 = por %p46, %p47
      %p49 = scmp.ne.s32.totalorder %s35, %s36
      %p50 = scmp.eq.s32.totalorder %s28, 1
      %p51 = por %p49, %p50
      %p53 = scmp.ne.s32.totalorder %s36, %s52
      %p54 = scmp.eq.s32.totalorder %s28, 0
      %p55 = por %p53, %p54
      %s57 = sadd.s32 %s56, 1
      %p60 = scmp.eq.s32.totalorder %s22, 1
      %p61 = scmp.ne.s32.totalorder %s56, %s58
      %p62 = scmp.eq.s32.totalorder %s22, 0
      %p63 = por %p61, %p62
      %p64 = scmp.ne.s32.totalorder %s56, %s58
      %p65 = scmp.eq.s32.totalorder %s27, 1
      %p66 = por %p64, %p65
      %p67 = scmp.ne.s32.totalorder %s58, %s59
      %p68 = scmp.eq.s32.totalorder %s27, 0
      %p69 = por %p67, %p68
      %p70 = scmp.ne.s32.totalorder %s58, %s59
      %p71 = scmp.eq.s32.totalorder %s28, 1
      %p72 = por %p70, %p71
      %p74 = scmp.ne.s32.totalorder %s59, %s73
      %p75 = scmp.eq.s32.totalorder %s28, 0
      %p76 = por %p74, %p75
      %s78 = sadd.s32 %s77, 1
      %p81 = scmp.eq.s32.totalorder %s22, 1
      %p82 = scmp.ne.s32.totalorder %s77, %s79
      %p83 = scmp.eq.s32.totalorder %s22, 0
      %p84 = por %p82, %p83
      %p85 = scmp.ne.s32.totalorder %s77, %s79
      %p86 = scmp.eq.s32.totalorder %s27, 1
      %p87 = por %p85, %p86
      %p88 = scmp.ne.s32.totalorder %s79, %s80
      %p89 = scmp.eq.s32.totalorder %s27, 0
      %p90 = por %p88, %p89
      %p91 = scmp.ne.s32.totalorder %s79, %s80
      %p92 = scmp.eq.s32.totalorder %s28, 1
      %p93 = por %p91, %p92
      %p95 = scmp.ne.s32.totalorder %s80, %s94
      %p96 = scmp.eq.s32.totalorder %s28, 0
      %p97 = por %p95, %p96
      %s99 = sadd.s32 %s98, 1
      %p102 = scmp.eq.s32.totalorder %s22, 1
      %p103 = scmp.ne.s32.totalorder %s98, %s100
      %p104 = scmp.eq.s32.totalorder %s22, 0
      %p105 = por %p103, %p104
      %p106 = scmp.ne.s32.totalorder %s98, %s100
      %p107 = scmp.eq.s32.totalorder %s27, 1
      %p108 = por %p106, %p107
      %p109 = scmp.ne.s32.totalorder %s100, %s101
      %p110 = scmp.eq.s32.totalorder %s27, 0
      %p111 = por %p109, %p110
      %p112 = scmp.ne.s32.totalorder %s100, %s101
      %p113 = scmp.eq.s32.totalorder %s28, 1
      %p114 = por %p112, %p113
      %p116 = scmp.ne.s32.totalorder %s101, %s115
      %p117 = scmp.eq.s32.totalorder %s28, 0
      %p118 = por %p116, %p117
      %s120 = sadd.s32 %s119, 1
      %p123 = scmp.eq.s32.totalorder %s22, 1
      %p124 = scmp.ne.s32.totalorder %s119, %s121
      %p125 = scmp.eq.s32.totalorder %s22, 0
      %p126 = por %p124, %p125
      %p127 = scmp.ne.s32.totalorder %s119, %s121
      %p128 = scmp.eq.s32.totalorder %s27, 1
      %p129 = por %p127, %p128
      %p130 = scmp.ne.s32.totalorder %s121, %s122
      %p131 = scmp.eq.s32.totalorder %s27, 0
      %p132 = por %p130, %p131
      %p133 = scmp.ne.s32.totalorder %s121, %s122
      %p134 = scmp.eq.s32.totalorder %s28, 1
      %p135 = por %p133, %p134
      %p137 = scmp.ne.s32.totalorder %s122, %s136
      %p138 = scmp.eq.s32.totalorder %s28, 0
      %p139 = por %p137, %p138
      %s141 = sadd.s32 %s140, 1
      %p144 = scmp.eq.s32.totalorder %s22, 1
      %p145 = scmp.ne.s32.totalorder %s140, %s142
      %p146 = scmp.eq.s32.totalorder %s22, 0
      %p147 = por %p145, %p146
      %p148 = scmp.ne.s32.totalorder %s140, %s142
      %p149 = scmp.eq.s32.totalorder %s27, 1
      %p150 = por %p148, %p149
      %p151 = scmp.ne.s32.totalorder %s142, %s143
      %p152 = scmp.eq.s32.totalorder %s27, 0
      %p153 = por %p151, %p152
      %p154 = scmp.ne.s32.totalorder %s142, %s143
      %p155 = scmp.eq.s32.totalorder %s28, 1
      %p156 = por %p154, %p155
      %p158 = scmp.ne.s32.totalorder %s143, %s157
      %p159 = scmp.eq.s32.totalorder %s28, 0
      %p160 = por %p158, %p159
      %s162 = sadd.s32 %s161, 1
      %p165 = scmp.eq.s32.totalorder %s22, 1
      %p166 = scmp.ne.s32.totalorder %s161, %s163
      %p167 = scmp.eq.s32.totalorder %s22, 0
      %p168 = por %p166, %p167
      %p169 = scmp.ne.s32.totalorder %s161, %s163
      %p170 = scmp.eq.s32.totalorder %s27, 1
      %p171 = por %p169, %p170
      %p172 = scmp.ne.s32.totalorder %s163, %s164
      %p173 = scmp.eq.s32.totalorder %s27, 0
      %p174 = por %p172, %p173
      %p175 = scmp.ne.s32.totalorder %s163, %s164
      %p176 = scmp.eq.s32.totalorder %s28, 1
      %p177 = por %p175, %p176
      %p179 = scmp.ne.s32.totalorder %s164, %s178
      %p180 = scmp.eq.s32.totalorder %s28, 0
      %p181 = por %p179, %p180
      %s183 = sadd.s32 %s182, 1
      %p186 = scmp.eq.s32.totalorder %s22, 1
      %p187 = scmp.ne.s32.totalorder %s182, %s184
      %p188 = scmp.eq.s32.totalorder %s22, 0
      %p189 = por %p187, %p188
      %p190 = scmp.ne.s32.totalorder %s182, %s184
      %p191 = scmp.eq.s32.totalorder %s27, 1
      %p192 = por %p190, %p191
      %p193 = scmp.ne.s32.totalorder %s184, %s185
      %p194 = scmp.eq.s32.totalorder %s27, 0
      %p195 = por %p193, %p194
      %p196 = scmp.ne.s32.totalorder %s184, %s185
      %p197 = scmp.eq.s32.totalorder %s28, 1
      %p198 = por %p196, %p197
      %p200 = scmp.ne.s32.totalorder %s185, %s199
      %p201 = scmp.eq.s32.totalorder %s28, 0
      %p202 = por %p200, %p201
      %s204 = sadd.s32 %s203, 1
      %p207 = scmp.eq.s32.totalorder %s22, 1
      %p208 = scmp.ne.s32.totalorder %s203, %s205
      %p209 = scmp.eq.s32.totalorder %s22, 0
      %p210 = por %p208, %p209
      %p211 = scmp.ne.s32.totalorder %s203, %s205
      %p212 = scmp.eq.s32.totalorder %s27, 1
      %p213 = por %p211, %p212
      %p214 = scmp.ne.s32.totalorder %s205, %s206
      %p215 = scmp.eq.s32.totalorder %s27, 0
      %p216 = por %p214, %p215
      %p217 = scmp.ne.s32.totalorder %s205, %s206
      %p218 = scmp.eq.s32.totalorder %s28, 1
      %p219 = por %p217, %p218
      %p221 = scmp.ne.s32.totalorder %s206, %s220
      %p222 = scmp.eq.s32.totalorder %s28, 0
      %p223 = por %p221, %p222
      %s225 = sadd.s32 %s224, 1
      %p228 = scmp.eq.s32.totalorder %s22, 1
      %p229 = scmp.ne.s32.totalorder %s224, %s226
      %p230 = scmp.eq.s32.totalorder %s22, 0
      %p231 = por %p229, %p230
      %p232 = scmp.ne.s32.totalorder %s224, %s226
      %p233 = scmp.eq.s32.totalorder %s27, 1
      %p234 = por %p232, %p233
      %p235 = scmp.ne.s32.totalorder %s226, %s227
      %p236 = scmp.eq.s32.totalorder %s27, 0
      %p237 = por %p235, %p236
      %p238 = scmp.ne.s32.totalorder %s226, %s227
      %p239 = scmp.eq.s32.totalorder %s28, 1
      %p240 = por %p238, %p239
      %p242 = scmp.ne.s32.totalorder %s227, %s241
      %p243 = scmp.eq.s32.totalorder %s28, 0
      %p244 = por %p242, %p243
      %s246 = sadd.s32 %s245, 1
      %p249 = scmp.eq.s32.totalorder %s22, 1
      %p250 = scmp.ne.s32.totalorder %s245, %s247
      %p251 = scmp.eq.s32.totalorder %s22, 0
      %p252 = por %p250, %p251
      %p253 = scmp.ne.s32.totalorder %s245, %s247
      %p254 = scmp.eq.s32.totalorder %s27, 1
      %p255 = por %p253, %p254
      %p256 = scmp.ne.s32.totalorder %s247, %s248
      %p257 = scmp.eq.s32.totalorder %s27, 0
      %p258 = por %p256, %p257
      %p259 = scmp.ne.s32.totalorder %s247, %s248
      %p260 = scmp.eq.s32.totalorder %s28, 1
      %p261 = por %p259, %p260
      %p263 = scmp.ne.s32.totalorder %s248, %s262
      %p264 = scmp.eq.s32.totalorder %s28, 0
      %p265 = por %p263, %p264
      %s267 = sadd.s32 %s266, 1
      %p270 = scmp.eq.s32.totalorder %s22, 1
      %p271 = scmp.ne.s32.totalorder %s266, %s268
      %p272 = scmp.eq.s32.totalorder %s22, 0
      %p273 = por %p271, %p272
      %p274 = scmp.ne.s32.totalorder %s266, %s268
      %p275 = scmp.eq.s32.totalorder %s27, 1
      %p276 = por %p274, %p275
      %p277 = scmp.ne.s32.totalorder %s268, %s269
      %p278 = scmp.eq.s32.totalorder %s27, 0
      %p279 = por %p277, %p278
      %p280 = scmp.ne.s32.totalorder %s268, %s269
      %p281 = scmp.eq.s32.totalorder %s28, 1
      %p282 = por %p280, %p281
      %p284 = scmp.ne.s32.totalorder %s269, %s283
      %p285 = scmp.eq.s32.totalorder %s28, 0
      %p286 = por %p284, %p285
      %s288 = sadd.s32 %s287, 1
      %p291 = scmp.eq.s32.totalorder %s22, 1
      %p292 = scmp.ne.s32.totalorder %s287, %s289
      %p293 = scmp.eq.s32.totalorder %s22, 0
      %p294 = por %p292, %p293
      %p295 = scmp.ne.s32.totalorder %s287, %s289
      %p296 = scmp.eq.s32.totalorder %s27, 1
      %p297 = por %p295, %p296
      %p298 = scmp.ne.s32.totalorder %s289, %s290
      %p299 = scmp.eq.s32.totalorder %s27, 0
      %p300 = por %p298, %p299
      %p301 = scmp.ne.s32.totalorder %s289, %s290
      %p302 = scmp.eq.s32.totalorder %s28, 1
      %p303 = por %p301, %p302
      %p305 = scmp.ne.s32.totalorder %s290, %s304
      %p306 = scmp.eq.s32.totalorder %s28, 0
      %p307 = por %p305, %p306
      %s308 = ssub.s32 %s22, %s29
      %p309 = scmp.eq.s32.totalorder %s308, 0
      %s311 = sadd.s32 %s310, 1
      %s312 = scalar_select %p309, %s310, %s311
      %p315 = pneg %p309
      %p316 = scmp.eq.s32.totalorder %s22, 1
      %p317 = por %p315, %p316
      %p318 = scmp.ne.s32.totalorder %s310, %s313
      %p319 = scmp.eq.s32.totalorder %s22, 0
      %p320 = por %p318, %p319
      %p321 = scmp.ne.s32.totalorder %s310, %s313
      %p322 = scmp.eq.s32.totalorder %s27, 1
      %p323 = por %p321, %p322
      %p324 = scmp.ne.s32.totalorder %s313, %s314
      %p325 = scmp.eq.s32.totalorder %s27, 0
      %p326 = por %p324, %p325
      %p327 = scmp.ne.s32.totalorder %s313, %s314
      %p328 = scmp.eq.s32.totalorder %s28, 1
      %p329 = por %p327, %p328
      %p331 = scmp.ne.s32.totalorder %s314, %s330
      %p332 = scmp.eq.s32.totalorder %s28, 0
      %p333 = por %p331, %p332
      %p334 = scmp.le.s32.totalorder 1, %s22
      %p335 = scmp.lt.s32.totalorder %s22, 3
      %p336 = pnand %p334, %p335
      %p337 = pneg %p336
      // Predicated region
      $region9: #{tpu_custom_call.1} parent=5 // pred_check
        _
      $region10: #{tpu_custom_call.1} parent=5 // pred_check_branch
        %339 = sbr.rel (%p336) target = $region12
      $region11: #{tpu_custom_call.1} parent=5 // pred_region
        %s340 = ssub.s32 %s22, 1
        // Predicated region
        $region13: #{tpu_custom_call.1} parent=11 // pred_check
          %p341 = pneg %p69
        $region14: #{tpu_custom_call.1} parent=11 // pred_check_branch
          %343 = sbr.rel (%p341) target = $region16
        $region15: #{tpu_custom_call.1} parent=11 // pred_region
          _
        $region16: #{tpu_custom_call.1} parent=11 // pred_fallthru
          _
        // Predicated region
        $region17: #{tpu_custom_call.1} parent=11 // pred_check
          %p344 = pneg %p90
        $region18: #{tpu_custom_call.1} parent=11 // pred_check_branch
          %346 = sbr.rel (%p344) target = $region20
        $region19: #{tpu_custom_call.1} parent=11 // pred_region
          _
        $region20: #{tpu_custom_call.1} parent=11 // pred_fallthru
          _
        // Predicated region
        $region21: #{tpu_custom_call.1} parent=11 // pred_check
          %p347 = pneg %p111
        $region22: #{tpu_custom_call.1} parent=11 // pred_check_branch
          %349 = sbr.rel (%p347) target = $region24
        $region23: #{tpu_custom_call.1} parent=11 // pred_region
          _
        $region24: #{tpu_custom_call.1} parent=11 // pred_fallthru
          _
        // Predicated region
        $region25: #{tpu_custom_call.1} parent=11 // pred_check
          %p350 = pneg %p132
        $region26: #{tpu_custom_call.1} parent=11 // pred_check_branch
          %352 = sbr.rel (%p350) target = $region28
        $region27: #{tpu_custom_call.1} parent=11 // pred_region
          _
        $region28: #{tpu_custom_call.1} parent=11 // pred_fallthru
          _
        // Predicated region
        $region29: #{tpu_custom_call.1} parent=11 // pred_check
          %p353 = pneg %p153
        $region30: #{tpu_custom_call.1} parent=11 // pred_check_branch
          %355 = sbr.rel (%p353) target = $region32
        $region31: #{tpu_custom_call.1} parent=11 // pred_region
          _
        $region32: #{tpu_custom_call.1} parent=11 // pred_fallthru
          _
        // Predicated region
        $region33: #{tpu_custom_call.1} parent=11 // pred_check
          %p356 = pneg %p174
        $region34: #{tpu_custom_call.1} parent=11 // pred_check_branch
          %358 = sbr.rel (%p356) target = $region36
        $region35: #{tpu_custom_call.1} parent=11 // pred_region
          _
        $region36: #{tpu_custom_call.1} parent=11 // pred_fallthru
          _
        // Predicated region
        $region37: #{tpu_custom_call.1} parent=11 // pred_check
          %p359 = pneg %p195
        $region38: #{tpu_custom_call.1} parent=11 // pred_check_branch
          %361 = sbr.rel (%p359) target = $region40
        $region39: #{tpu_custom_call.1} parent=11 // pred_region
          _
        $region40: #{tpu_custom_call.1} parent=11 // pred_fallthru
          _
        // Predicated region
        $region41: #{tpu_custom_call.1} parent=11 // pred_check
          %p362 = pneg %p216
        $region42: #{tpu_custom_call.1} parent=11 // pred_check_branch
          %364 = sbr.rel (%p362) target = $region44
        $region43: #{tpu_custom_call.1} parent=11 // pred_region
          _
        $region44: #{tpu_custom_call.1} parent=11 // pred_fallthru
          _
        // Predicated region
        $region45: #{tpu_custom_call.1} parent=11 // pred_check
          %p365 = pneg %p237
        $region46: #{tpu_custom_call.1} parent=11 // pred_check_branch
          %367 = sbr.rel (%p365) target = $region48
        $region47: #{tpu_custom_call.1} parent=11 // pred_region
          _
        $region48: #{tpu_custom_call.1} parent=11 // pred_fallthru
          _
        // Predicated region
        $region49: #{tpu_custom_call.1} parent=11 // pred_check
          %p368 = pneg %p258
        $region50: #{tpu_custom_call.1} parent=11 // pred_check_branch
          %370 = sbr.rel (%p368) target = $region52
        $region51: #{tpu_custom_call.1} parent=11 // pred_region
          _
        $region52: #{tpu_custom_call.1} parent=11 // pred_fallthru
          _
        // Predicated region
        $region53: #{tpu_custom_call.1} parent=11 // pred_check
          %p371 = pneg %p279
        $region54: #{tpu_custom_call.1} parent=11 // pred_check_branch
          %373 = sbr.rel (%p371) target = $region56
        $region55: #{tpu_custom_call.1} parent=11 // pred_region
          _
        $region56: #{tpu_custom_call.1} parent=11 // pred_fallthru
          _
        // Predicated region
        $region57: #{tpu_custom_call.1} parent=11 // pred_check
          %p374 = pneg %p300
        $region58: #{tpu_custom_call.1} parent=11 // pred_check_branch
          %376 = sbr.rel (%p374) target = $region60
        $region59: #{tpu_custom_call.1} parent=11 // pred_region
          _
        $region60: #{tpu_custom_call.1} parent=11 // pred_fallthru
          _
      $region12: #{tpu_custom_call.1} parent=5 // pred_fallthru
        _
      %p377 = scmp.lt.s32.totalorder %s22, 2
      // Predicated region
      $region61: #{tpu_custom_call.1} parent=5 // pred_check
        %p378 = pneg %p377
      $region62: #{tpu_custom_call.1} parent=5 // pred_check_branch
        %380 = sbr.rel (%p378) target = $region64
      $region63: #{tpu_custom_call.1} parent=5 // pred_region
        // Predicated region
        $region65: #{tpu_custom_call.1} parent=63 // pred_check
          %p381 = pneg %p42
        $region66: #{tpu_custom_call.1} parent=63 // pred_check_branch
          %383 = sbr.rel (%p381) target = $region68
        $region67: #{tpu_custom_call.1} parent=63 // pred_region
          %p384 = scmp.lt.s32.totalorder %s22, 1
          %s385 = scalar_select %p384, %s22, 1
          %s386 = smul.addr %s385, 8
          %s387 = scalar_lea.vmem %s0, %s386
        $region68: #{tpu_custom_call.1} parent=63 // pred_fallthru
          _
      $region64: #{tpu_custom_call.1} parent=5 // pred_fallthru
        _
      %p388 = scmp.le.s32.totalorder 1, %s22
      %p389 = scmp.lt.s32.totalorder %s22, 3
      %p390 = pnand %p388, %p389
      %p391 = pneg %p390
      // Predicated region
      $region69: #{tpu_custom_call.1} parent=5 // pred_check
        _
      $region70: #{tpu_custom_call.1} parent=5 // pred_check_branch
        %393 = sbr.rel (%p390) target = $region72
      $region71: #{tpu_custom_call.1} parent=5 // pred_region
        %s394 = ssub.s32 %s22, 1
        %p395 = scmp.lt.s32.totalorder %s27, 1
        %s396 = scalar_select %p395, %s27, 1
        %s397 = smul.addr %s396, 8
        %s398 = scalar_lea.vmem %s0, %s397
        %p399 = pneg %p48
        %p400 = pneg %p45
        %p401 = pneg %p69
        %p402 = pneg %p66
        %p403 = pneg %p90
        %p404 = pneg %p87
        %p405 = pneg %p111
        %p406 = pneg %p108
        %p407 = pneg %p132
        %p408 = pneg %p129
        %p409 = pneg %p153
        %p410 = pneg %p150
        %p411 = pneg %p174
        %p412 = pneg %p171
        %p413 = pneg %p195
        %p414 = pneg %p192
        %p415 = pneg %p216
        %p416 = pneg %p213
        %p417 = pneg %p237
        %p418 = pneg %p234
        %p419 = pneg %p258
        %p420 = pneg %p255
        %p421 = pneg %p279
        %p422 = pneg %p276
        %p423 = pneg %p300
        %p424 = pneg %p297
        %p425 = pneg %p326
        %p426 = pneg %p323
        %s427 = sand.u32 %s313, 1
        %s428 = scalar_lea.sflag [#allocation3], %s427
        %s429 = sand.u32 %s313, 1
        %s430 = smul.addr %s429, 8
        %s431 = scalar_lea.vmem [#allocation2], %s430
        %p432 = scmp.lt.s32.totalorder %s27, 1
        %s433 = scalar_select %p432, %s27, 1
        %s434 = smul.addr %s433, 8
        %s435 = scalar_lea.vmem %s0, %s434
        %v437 = vld [vmem:[%s435] sm:$0xff]
        %v438 = vld [vmem:[%s2] sm:$0x1]
        %v439 = vld [vmem:[%s3] sm:$0x1]
        %vm440 = vcmask 261120
        %v441 = vsel %vm440, %v437, 0.0
        %442 = vadd.xlane.f32.xlu0 %v441
        %v443 = vpop.xlane.xlu0 %442
        %v444 = vrcp.pop 32.0
        %v445 = vmul.f32 32.0, %v444
        %v446 = vsub.f32 1.0, %v445
        %v447 = vmul.f32 %v444, %v446
        %v448 = vadd.f32 %v444, %v447
        %vm449 = vweird.f32 %v444
        %v450 = vsel %vm449, %v444, %v448
        %v451 = vmul.f32 %v443, %v450
        %v452 = vsub.f32 %v437, %v451
        %v453 = vmul.f32 %v452, %v452
        %v454 = vsel %vm440, %v453, 0.0
        %455 = vadd.xlane.f32.xlu0 %v454
        %v456 = vpop.xlane.xlu0 %455
        %v457 = vmul.f32 %v456, %v450
        %v458 = vadd.f32 %v457, 1e-05
        %v459 = vrsqrt.pop %v458
        %v460 = vmul.f32 %v459, %v458
        %v461 = vmul.f32 %v460, %v459
        %v462 = vmul.f32 0.5, %v461
        %v463 = vsub.f32 1.5, %v462
        %v464 = vmul.f32 %v459, %v463
        %vm465 = vweird.f32 %v458
        %vm466 = vweird.f32 %v459
        %vm467 = vmor %vm465, %vm466
        %v468 = vsel %vm467, %v459, %v464
        %v469 = vmul.f32 %v452, %v468
        %v471 = vperm.slane %v438, 0
        %v473 = vmul.f32 %v469, %v471
        %v475 = vperm.slane %v439, 0
        %v477 = vadd.f32 %v473, %v475
        %v478 = vpack.c.bf16 %v477, %v477
        %v479 = vld [vmem:[%s4] sm:$0xf]
        %v480 = vld [vmem:[%s4 + $0x4] sm:$0xf]
        %v481 = vld [vmem:[%s4 + $0x8] sm:$0xf]
        %v482 = vld [vmem:[%s4 + $0xc] sm:$0xf]
        %v487 = vunpack.c.l.b16 %v479
        %v488 = vunpack.c.l.b16 %v480
        %v489 = vunpack.c.l.b16 %v481
        %v490 = vunpack.c.l.b16 %v482
        %v491 = vpack.c.b16 %v488, %v487
        %v492 = vpack.c.b16 %v490, %v489
        %v496 = vsel %vm440, %v478, 0
        %498 = vmatpush.bf16.msra.mxu0 0
        %499 = vmatpush.bf16.msra.mxu0 0
        %500 = vmatpush.bf16.msra.mxu0 0
        %501 = vmatpush.bf16.msra.mxu0 0
        %502 = vmatpush.bf16.msra.mxu0 0
        %503 = vmatpush.bf16.msra.mxu0 0
        %504 = vmatpush.bf16.msra.mxu0 %v492
        %505 = vmatpush.bf16.msra.mxu0 %v491
        %506 = vmatmul.bf16.gmra.mxu0 %v496
        %v507 = vpop.f32.mrf.mxu0
        %v508 = vadd.f32 0.0, %v507
        %v509 = vpop.f32.mrf.mxu0
        %510 = vdwg.mxu0
        %512 = vrot.lane.b32.xlu0 %v508, 104
        %v513 = vpop.permute.xlu0 %512
        %515 = vrot.lane.b32.xlu0 %v508, 80
        %v516 = vpop.permute.xlu0 %515
        %518 = vrot.lane.b32.xlu0 %v508, 56
        %v519 = vpop.permute.xlu0 %518
        %v521 = vpack.c.bf16 %v508, %v508
        %v522 = vpack.c.bf16 %v513, %v513
        %v523 = vpack.c.bf16 %v516, %v516
        %v524 = vpack.c.bf16 %v519, %v519
        %v525 = vld [vmem:[%s1] sm:$0xff]
        %v527 = vunpack.c.l.b16 %v521
        %v528 = vpack.c.b16 %v527, %v527
        %529 = vrot.lane.b32.xlu0 %v528, 120
        %v530 = vpop.permute.xlu0 %529
        %vm531 = vcmask 64512
        %v533 = vsel %vm531, %v521, 0
        %v536 = vsel %vm531, %v530, 0
        %538 = vmatpush.bf16.xpose.msra.mxu0 0
        %539 = vmatpush.bf16.xpose.msra.mxu0 0
        %540 = vmatpush.bf16.xpose.msra.mxu0 0
        %541 = vmatpush.bf16.xpose.msra.mxu0 0
        %542 = vmatpush.bf16.xpose.msra.mxu0 0
        %543 = vmatpush.bf16.xpose.msra.mxu0 0
        %544 = vmatpush.bf16.xpose.msra.mxu0 0
        %545 = vmatpush.bf16.xpose.msra.mxu0 %v536
        %546 = vmatmul.bf16.gmra.mxu0 %v533
        %v547 = vpop.f32.mrf.mxu0
        %v548 = vadd.f32 %v525, %v547
        %v549 = vpop.f32.mrf.mxu0
        %550 = vdwg.mxu0
        %v552 = vunpack.c.l.b16 %v522
        %v553 = vpack.c.b16 %v552, %v552
        %554 = vrot.lane.b32.xlu0 %v553, 120
        %v555 = vpop.permute.xlu0 %554
        %v557 = vsel %vm531, %v522, 0
        %v560 = vsel %vm531, %v555, 0
        %562 = vmatpush.bf16.xpose.msra.mxu0 0
        %563 = vmatpush.bf16.xpose.msra.mxu0 0
        %564 = vmatpush.bf16.xpose.msra.mxu0 0
        %565 = vmatpush.bf16.xpose.msra.mxu0 0
        %566 = vmatpush.bf16.xpose.msra.mxu0 0
        %567 = vmatpush.bf16.xpose.msra.mxu0 0
        %568 = vmatpush.bf16.xpose.msra.mxu0 0
        %569 = vmatpush.bf16.xpose.msra.mxu0 %v560
        %570 = vmatmul.bf16.gmra.mxu0 %v557
        %v571 = vpop.f32.mrf.mxu0
        %v572 = vadd.f32 %v525, %v571
        %v573 = vpop.f32.mrf.mxu0
        %574 = vdwg.mxu0
        %v576 = vunpack.c.l.b16 %v523
        %v577 = vpack.c.b16 %v576, %v576
        %578 = vrot.lane.b32.xlu0 %v577, 120
        %v579 = vpop.permute.xlu0 %578
        %v581 = vsel %vm531, %v523, 0
        %v584 = vsel %vm531, %v579, 0
        %586 = vmatpush.bf16.xpose.msra.mxu0 0
        %587 = vmatpush.bf16.xpose.msra.mxu0 0
        %588 = vmatpush.bf16.xpose.msra.mxu0 0
        %589 = vmatpush.bf16.xpose.msra.mxu0 0
        %590 = vmatpush.bf16.xpose.msra.mxu0 0
        %591 = vmatpush.bf16.xpose.msra.mxu0 0
        %592 = vmatpush.bf16.xpose.msra.mxu0 0
        %593 = vmatpush.bf16.xpose.msra.mxu0 %v584
        %594 = vmatmul.bf16.gmra.mxu0 %v581
        %v595 = vpop.f32.mrf.mxu0
        %v596 = vadd.f32 %v525, %v595
        %v597 = vpop.f32.mrf.mxu0
        %598 = vdwg.mxu0
        %v600 = vunpack.c.l.b16 %v524
        %v601 = vpack.c.b16 %v600, %v600
        %602 = vrot.lane.b32.xlu0 %v601, 120
        %v603 = vpop.permute.xlu0 %602
        %v605 = vsel %vm531, %v524, 0
        %v608 = vsel %vm531, %v603, 0
        %610 = vmatpush.bf16.xpose.msra.mxu0 0
        %611 = vmatpush.bf16.xpose.msra.mxu0 0
        %612 = vmatpush.bf16.xpose.msra.mxu0 0
        %613 = vmatpush.bf16.xpose.msra.mxu0 0
        %614 = vmatpush.bf16.xpose.msra.mxu0 0
        %615 = vmatpush.bf16.xpose.msra.mxu0 0
        %616 = vmatpush.bf16.xpose.msra.mxu0 0
        %617 = vmatpush.bf16.xpose.msra.mxu0 %v608
        %618 = vmatmul.bf16.gmra.mxu0 %v605
        %v619 = vpop.f32.mrf.mxu0
        %v620 = vadd.f32 %v525, %v619
        %v621 = vpop.f32.mrf.mxu0
        %622 = vdwg.mxu0
        %v623 = vsel %vm531, %v548, -inf
        %624 = vmax.xlane.f32.xlu0 %v623
        %v625 = vpop.xlane.xlu0 %624
        %v626 = vsel %vm531, %v572, -inf
        %627 = vmax.xlane.f32.xlu0 %v626
        %v628 = vpop.xlane.xlu0 %627
        %v629 = vsel %vm531, %v596, -inf
        %630 = vmax.xlane.f32.xlu0 %v629
        %v631 = vpop.xlane.xlu0 %630
        %v632 = vsel %vm531, %v620, -inf
        %633 = vmax.xlane.f32.xlu0 %v632
        %v634 = vpop.xlane.xlu0 %633
        %v635 = vsub.f32 %v548, %v625
        %v636 = vsub.f32 %v572, %v628
        %v637 = vsub.f32 %v596, %v631
        %v638 = vsub.f32 %v620, %v634
        %v639 = vmul.f32 %v635, 1.442695
        %v640 = vpow.pop %v639
        %v641 = vmul.f32 %v636, 1.442695
        %v642 = vpow.pop %v641
        %v643 = vmul.f32 %v637, 1.442695
        %v644 = vpow.pop %v643
        %v645 = vmul.f32 %v638, 1.442695
        %v646 = vpow.pop %v645
        %v647 = vsel %vm531, %v640, 0.0
        %648 = vadd.xlane.f32.xlu0 %v647
        %v649 = vpop.xlane.xlu0 %648
        %v650 = vsel %vm531, %v642, 0.0
        %651 = vadd.xlane.f32.xlu0 %v650
        %v652 = vpop.xlane.xlu0 %651
        %v653 = vsel %vm531, %v644, 0.0
        %654 = vadd.xlane.f32.xlu0 %v653
        %v655 = vpop.xlane.xlu0 %654
        %v656 = vsel %vm531, %v646, 0.0
        %657 = vadd.xlane.f32.xlu0 %v656
        %v658 = vpop.xlane.xlu0 %657
        %v659 = vrcp.pop %v649
        %v660 = vrcp.pop %v652
        %v661 = vrcp.pop %v655
        %v662 = vrcp.pop %v658
        %v663 = vmul.f32 %v640, %v659
        %v664 = vmul.f32 %v642, %v660
        %v665 = vmul.f32 %v644, %v661
        %v666 = vmul.f32 %v646, %v662
        %v667 = vpack.c.bf16 %v663, %v663
        %v668 = vpack.c.bf16 %v664, %v664
        %v669 = vpack.c.bf16 %v665, %v665
        %v670 = vpack.c.bf16 %v666, %v666
        %671 = vrot.lane.b32.xlu0 %v528, 112
        %v672 = vpop.permute.xlu0 %671
        %v674 = vsel %vm531, %v667, 0
        %vm676 = vcmask 1043456
        %v678 = vsel %vm676, %v672, 0
        %680 = vmatpush.bf16.msra.mxu0 0
        %681 = vmatpush.bf16.msra.mxu0 0
        %682 = vmatpush.bf16.msra.mxu0 0
        %683 = vmatpush.bf16.msra.mxu0 0
        %684 = vmatpush.bf16.msra.mxu0 0
        %685 = vmatpush.bf16.msra.mxu0 0
        %686 = vmatpush.bf16.msra.mxu0 0
        %687 = vmatpush.bf16.msra.mxu0 %v678
        %688 = vmatmul.bf16.gmra.mxu0 %v674
        %v689 = vpop.f32.mrf.mxu0
        %v690 = vadd.f32 0.0, %v689
        %v691 = vpop.f32.mrf.mxu0
        %692 = vdwg.mxu0
        %693 = vrot.lane.b32.xlu0 %v553, 112
        %v694 = vpop.permute.xlu0 %693
        %v696 = vsel %vm531, %v668, 0
        %v699 = vsel %vm676, %v694, 0
        %701 = vmatpush.bf16.msra.mxu0 0
        %702 = vmatpush.bf16.msra.mxu0 0
        %703 = vmatpush.bf16.msra.mxu0 0
        %704 = vmatpush.bf16.msra.mxu0 0
        %705 = vmatpush.bf16.msra.mxu0 0
        %706 = vmatpush.bf16.msra.mxu0 0
        %707 = vmatpush.bf16.msra.mxu0 0
        %708 = vmatpush.bf16.msra.mxu0 %v699
        %709 = vmatmul.bf16.gmra.mxu0 %v696
        %v710 = vpop.f32.mrf.mxu0
        %v711 = vadd.f32 0.0, %v710
        %v712 = vpop.f32.mrf.mxu0
        %713 = vdwg.mxu0
        %714 = vrot.lane.b32.xlu0 %v577, 112
        %v715 = vpop.permute.xlu0 %714
        %v717 = vsel %vm531, %v669, 0
        %v720 = vsel %vm676, %v715, 0
        %722 = vmatpush.bf16.msra.mxu0 0
        %723 = vmatpush.bf16.msra.mxu0 0
        %724 = vmatpush.bf16.msra.mxu0 0
        %725 = vmatpush.bf16.msra.mxu0 0
        %726 = vmatpush.bf16.msra.mxu0 0
        %727 = vmatpush.bf16.msra.mxu0 0
        %728 = vmatpush.bf16.msra.mxu0 0
        %729 = vmatpush.bf16.msra.mxu0 %v720
        %730 = vmatmul.bf16.gmra.mxu0 %v717
        %v731 = vpop.f32.mrf.mxu0
        %v732 = vadd.f32 0.0, %v731
        %v733 = vpop.f32.mrf.mxu0
        %734 = vdwg.mxu0
        %735 = vrot.lane.b32.xlu0 %v601, 112
        %v736 = vpop.permute.xlu0 %735
        %v738 = vsel %vm531, %v670, 0
        %v741 = vsel %vm676, %v736, 0
        %743 = vmatpush.bf16.msra.mxu0 0
        %744 = vmatpush.bf16.msra.mxu0 0
        %745 = vmatpush.bf16.msra.mxu0 0
        %746 = vmatpush.bf16.msra.mxu0 0
        %747 = vmatpush.bf16.msra.mxu0 0
        %748 = vmatpush.bf16.msra.mxu0 0
        %749 = vmatpush.bf16.msra.mxu0 0
        %750 = vmatpush.bf16.msra.mxu0 %v741
        %751 = vmatmul.bf16.gmra.mxu0 %v738
        %v752 = vpop.f32.mrf.mxu0
        %v753 = vadd.f32 0.0, %v752
        %v754 = vpop.f32.mrf.mxu0
        %755 = vdwg.mxu0
        %v756 = vpack.c.bf16 %v690, %v690
        %v757 = vpack.c.bf16 %v711, %v711
        %v758 = vpack.c.bf16 %v732, %v732
        %v759 = vpack.c.bf16 %v753, %v753
        %v760 = vld [vmem:[%s5] sm:$0xf]
        %v761 = vld [vmem:[%s5 + $0x4] sm:$0xf]
        %v762 = vld [vmem:[%s5 + $0x8] sm:$0xf]
        %v763 = vld [vmem:[%s5 + $0xc] sm:$0xf]
        %v765 = vsel %vm531, %v756, 0
        %v768 = vsel %vm676, %v760, 0
        %770 = vmatpush.bf16.msra.mxu0 0
        %771 = vmatpush.bf16.msra.mxu0 0
        %772 = vmatpush.bf16.msra.mxu0 0
        %773 = vmatpush.bf16.msra.mxu0 0
        %774 = vmatpush.bf16.msra.mxu0 0
        %775 = vmatpush.bf16.msra.mxu0 0
        %776 = vmatpush.bf16.msra.mxu0 0
        %777 = vmatpush.bf16.msra.mxu0 %v768
        %778 = vmatmul.bf16.gmra.mxu0 %v765
        %v779 = vpop.f32.mrf.mxu0
        %v780 = vadd.f32 0.0, %v779
        %v781 = vpop.f32.mrf.mxu0
        %782 = vdwg.mxu0
        %v784 = vsel %vm531, %v757, 0
        %v787 = vsel %vm676, %v761, 0
        %789 = vmatpush.bf16.msra.mxu0 0
        %790 = vmatpush.bf16.msra.mxu0 0
        %791 = vmatpush.bf16.msra.mxu0 0
        %792 = vmatpush.bf16.msra.mxu0 0
        %793 = vmatpush.bf16.msra.mxu0 0
        %794 = vmatpush.bf16.msra.mxu0 0
        %795 = vmatpush.bf16.msra.mxu0 0
        %796 = vmatpush.bf16.msra.mxu0 %v787
        %797 = vmatmul.bf16.gmra.mxu0 %v784
        %v798 = vpop.f32.mrf.mxu0
        %v799 = vadd.f32 0.0, %v798
        %v800 = vpop.f32.mrf.mxu0
        %801 = vdwg.mxu0
        %v803 = vsel %vm531, %v758, 0
        %v806 = vsel %vm676, %v762, 0
        %808 = vmatpush.bf16.msra.mxu0 0
        %809 = vmatpush.bf16.msra.mxu0 0
        %810 = vmatpush.bf16.msra.mxu0 0
        %811 = vmatpush.bf16.msra.mxu0 0
        %812 = vmatpush.bf16.msra.mxu0 0
        %813 = vmatpush.bf16.msra.mxu0 0
        %814 = vmatpush.bf16.msra.mxu0 0
        %815 = vmatpush.bf16.msra.mxu0 %v806
        %816 = vmatmul.bf16.gmra.mxu0 %v803
        %v817 = vpop.f32.mrf.mxu0
        %v818 = vadd.f32 0.0, %v817
        %v819 = vpop.f32.mrf.mxu0
        %820 = vdwg.mxu0
        %v822 = vsel %vm531, %v759, 0
        %v825 = vsel %vm676, %v763, 0
        %827 = vmatpush.bf16.msra.mxu0 0
        %828 = vmatpush.bf16.msra.mxu0 0
        %829 = vmatpush.bf16.msra.mxu0 0
        %830 = vmatpush.bf16.msra.mxu0 0
        %831 = vmatpush.bf16.msra.mxu0 0
        %832 = vmatpush.bf16.msra.mxu0 0
        %833 = vmatpush.bf16.msra.mxu0 0
        %834 = vmatpush.bf16.msra.mxu0 %v825
        %835 = vmatmul.bf16.gmra.mxu0 %v822
        %v836 = vpop.f32.mrf.mxu0
        %v837 = vadd.f32 0.0, %v836
        %v838 = vpop.f32.mrf.mxu0
        %839 = vdwg.mxu0
        %v840 = vadd.f32 %v780, %v799
        %v841 = vadd.f32 %v840, %v818
        %v842 = vadd.f32 %v841, %v837
        %v843 = vadd.f32 %v437, %v842
        %v844 = vld [vmem:[%s6] sm:$0x1]
        %v846 = vperm.slane %v844, 0
        %v848 = vadd.f32 %v843, %v846
        %v849 = vld [vmem:[%s7] sm:$0x1]
        %v850 = vld [vmem:[%s8] sm:$0x1]
        %v851 = vsel %vm440, %v848, 0.0
        %852 = vadd.xlane.f32.xlu0 %v851
        %v853 = vpop.xlane.xlu0 %852
        %v854 = vmul.f32 %v853, %v450
        %v855 = vsub.f32 %v848, %v854
        %v856 = vmul.f32 %v855, %v855
        %v857 = vsel %vm440, %v856, 0.0
        %858 = vadd.xlane.f32.xlu0 %v857
        %v859 = vpop.xlane.xlu0 %858
        %v860 = vmul.f32 %v859, %v450
        %v861 = vadd.f32 %v860, 1e-05
        %v862 = vrsqrt.pop %v861
        %v863 = vmul.f32 %v862, %v861
        %v864 = vmul.f32 %v863, %v862
        %v865 = vmul.f32 0.5, %v864
        %v866 = vsub.f32 1.5, %v865
        %v867 = vmul.f32 %v862, %v866
        %vm868 = vweird.f32 %v861
        %vm869 = vweird.f32 %v862
        %vm870 = vmor %vm868, %vm869
        %v871 = vsel %vm870, %v862, %v867
        %v872 = vmul.f32 %v855, %v871
        %v874 = vperm.slane %v849, 0
        %v876 = vmul.f32 %v872, %v874
        %v878 = vperm.slane %v850, 0
        %v880 = vadd.f32 %v876, %v878
        %v881 = vpack.c.bf16 %v880, %v880
        %v882 = vld [vmem:[%s9] sm:$0xf]
        %v883 = vld [vmem:[%s9 + $0x4] sm:$0xf]
        %v884 = vld [vmem:[%s9 + $0x8] sm:$0xf]
        %v885 = vld [vmem:[%s9 + $0xc] sm:$0xf]
        %v886 = vld [vmem:[%s10] sm:$0x1]
        %v888 = vperm.slane %v886, 0
        %v894 = vunpack.c.l.b16 %v882
        %v895 = vunpack.c.l.b16 %v883
        %v896 = vunpack.c.l.b16 %v884
        %v897 = vunpack.c.l.b16 %v885
        %v898 = vpack.c.b16 %v895, %v894
        %v899 = vpack.c.b16 %v897, %v896
        %v903 = vsel %vm440, %v881, 0
        %905 = vmatpush.bf16.msra.mxu0 0
        %906 = vmatpush.bf16.msra.mxu0 0
        %907 = vmatpush.bf16.msra.mxu0 0
        %908 = vmatpush.bf16.msra.mxu0 0
        %909 = vmatpush.bf16.msra.mxu0 0
        %910 = vmatpush.bf16.msra.mxu0 0
        %911 = vmatpush.bf16.msra.mxu0 %v899
        %912 = vmatpush.bf16.msra.mxu0 %v898
        %913 = vmatmul.bf16.gmra.mxu0 %v903
        %v914 = vpop.f32.mrf.mxu0
        %v915 = vadd.f32 %v888, %v914
        %v916 = vpop.f32.mrf.mxu0
        %917 = vdwg.mxu0
        %v918 = vmax.f32 %v915, 0.0
        %v919 = vpack.c.bf16 %v918, %v918
        %v920 = vld [vmem:[%s11] sm:$0xf]
        %v921 = vld [vmem:[%s11 + $0x4] sm:$0xf]
        %v922 = vld [vmem:[%s11 + $0x8] sm:$0xf]
        %v923 = vld [vmem:[%s11 + $0xc] sm:$0xf]
        %v924 = vld [vmem:[%s11 + $0x10] sm:$0xf]
        %v925 = vld [vmem:[%s11 + $0x14] sm:$0xf]
        %v926 = vld [vmem:[%s11 + $0x18] sm:$0xf]
        %v927 = vld [vmem:[%s11 + $0x1c] sm:$0xf]
        %v928 = vld [vmem:[%s11 + $0x20] sm:$0xf]
        %v929 = vld [vmem:[%s11 + $0x24] sm:$0xf]
        %v930 = vld [vmem:[%s11 + $0x28] sm:$0xf]
        %v931 = vld [vmem:[%s11 + $0x2c] sm:$0xf]
        %v932 = vld [vmem:[%s11 + $0x30] sm:$0xf]
        %v933 = vld [vmem:[%s11 + $0x34] sm:$0xf]
        %v934 = vld [vmem:[%s11 + $0x38] sm:$0xf]
        %v935 = vld [vmem:[%s11 + $0x3c] sm:$0xf]
        %v936 = vld [vmem:[%s12] sm:$0x1]
        %v938 = vperm.slane %v936, 0
        %v956 = vunpack.c.l.b16 %v920
        %v957 = vunpack.c.l.b16 %v921
        %v958 = vunpack.c.l.b16 %v922
        %v959 = vunpack.c.l.b16 %v923
        %v960 = vunpack.c.l.b16 %v924
        %v961 = vunpack.c.l.b16 %v925
        %v962 = vunpack.c.l.b16 %v926
        %v963 = vunpack.c.l.b16 %v927
        %v964 = vunpack.c.l.b16 %v928
        %v965 = vunpack.c.l.b16 %v929
        %v966 = vunpack.c.l.b16 %v930
        %v967 = vunpack.c.l.b16 %v931
        %v968 = vunpack.c.l.b16 %v932
        %v969 = vunpack.c.l.b16 %v933
        %v970 = vunpack.c.l.b16 %v934
        %v971 = vunpack.c.l.b16 %v935
        %v972 = vpack.c.b16 %v957, %v956
        %v973 = vpack.c.b16 %v959, %v958
        %v974 = vpack.c.b16 %v961, %v960
        %v975 = vpack.c.b16 %v963, %v962
        %v976 = vpack.c.b16 %v965, %v964
        %v977 = vpack.c.b16 %v967, %v966
        %v978 = vpack.c.b16 %v969, %v968
        %v979 = vpack.c.b16 %v971, %v970
        %988 = vmatpush.bf16.msra.mxu0 %v979
        %989 = vmatpush.bf16.msra.mxu0 %v978
        %990 = vmatpush.bf16.msra.mxu0 %v977
        %991 = vmatpush.bf16.msra.mxu0 %v976
        %992 = vmatpush.bf16.msra.mxu0 %v975
        %993 = vmatpush.bf16.msra.mxu0 %v974
        %994 = vmatpush.bf16.msra.mxu0 %v973
        %995 = vmatpush.bf16.msra.mxu0 %v972
        %996 = vmatmul.bf16.gmra.mxu0 %v919
        %v997 = vpop.f32.mrf.mxu0
        %v998 = vadd.f32 %v938, %v997
        %v999 = vpop.f32.mrf.mxu0
        %1000 = vdwg.mxu0
        %v1001 = vadd.f32 %v848, %v998
        %1002 = vst.msk [vmem:[%s431] sm:$0xff] %vm440, %v1001
        %s1003 = sand.u32 %s313, 1
        %s1004 = scalar_lea.sflag [#allocation3], %s1003
        %s1005 = sand.u32 %s313, 1
        %s1006 = smul.addr %s1005, 8
        %s1007 = scalar_lea.vmem [#allocation2], %s1006
        // Predicated region
        $region73: #{tpu_custom_call.1} parent=71 // pred_check
          %p1008 = pneg %p323
        $region74: #{tpu_custom_call.1} parent=71 // pred_check_branch
          %1010 = sbr.rel (%p1008) target = $region76
        $region75: #{tpu_custom_call.1} parent=71 // pred_region
          %1012 = vsyncadd %s1004, 0
          %s1013 = smul.addr %s27, 8
          %s1014 = scalar_lea.hbm %s13, %s1013
          %s1016 = sshll.u32 %s1007, 4
          %s1017 = int_to_ptr.vmem [resolvable:$true] %s1016
          %s1018 = sshll.u32 %s1014, 4
          %s1019 = int_to_ptr.hbm [resolvable:$true] %s1018
          %1021 = dma.vmem_to_hbm [thread:$0]  %s1017, 128, %s1019, %s1004
        $region76: #{tpu_custom_call.1} parent=71 // pred_fallthru
          _
      $region72: #{tpu_custom_call.1} parent=5 // pred_fallthru
        _
      %p1022 = scmp.le.s32.totalorder 2, %s22
      // Predicated region
      $region77: #{tpu_custom_call.1} parent=5 // pred_check
        %p1023 = pneg %p1022
      $region78: #{tpu_custom_call.1} parent=5 // pred_check_branch
        %1025 = sbr.rel (%p1023) target = $region80
      $region79: #{tpu_custom_call.1} parent=5 // pred_region
        %s1026 = ssub.s32 %s22, 2
        // Predicated region
        $region81: #{tpu_custom_call.1} parent=79 // pred_check
          %p1027 = pneg %p329
        $region82: #{tpu_custom_call.1} parent=79 // pred_check_branch
          %1029 = sbr.rel (%p1027) target = $region84
        $region83: #{tpu_custom_call.1} parent=79 // pred_region
          %s1030 = sand.u32 %s314, 1
          %s1031 = scalar_lea.sflag [#allocation3], %s1030
          %s1032 = sand.u32 %s314, 1
          %s1033 = smul.addr %s1032, 8
          %s1034 = scalar_lea.vmem [#allocation2], %s1033
          %1036 = dma.done %s1031, 128
        $region84: #{tpu_custom_call.1} parent=79 // pred_fallthru
          _
      $region80: #{tpu_custom_call.1} parent=5 // pred_fallthru
        _
    $region6: #{tpu_custom_call.1} parent=1 // loop_footer
      %s26 = sadd.s32 1, %s22
    $region7: #{tpu_custom_call.1} parent=1 // loop_footer_branch
      %21 = sbr.rel target = $region3
    $region8: #{tpu_custom_call.1} parent=1 // loop_exit
      _
    %1037 = vsyncpa [#allocation3], 1
    %s1038 = scalar_lea.sflag [#allocation3], 1
    %1039 = vsyncpa %s1038, 1

</llo_original>
